<compile_context>
chip_gen: v7x
topology: tpu7x:2x2x1
jax: 0.10.0
libtpu: 0.0.40
codegen_flags: <defaults>
</compile_context>

<pallas_src>
import functools

import jax
import jax.numpy as jnp
from jax.experimental import pallas as pl
from jax.experimental.pallas import tpu as pltpu


# ----------------------------- small helpers --------------------------------

def _round_up(x: int, m: int) -> int:
    return ((x + m - 1) // m) * m


def _cdiv(a: int, b: int) -> int:
    return -(-a // b)


def _pick_tile(dim: int, max_tile: int, align: int) -> int:
    """Largest tile <= max_tile (aligned) such that padding waste is minimal."""
    dim = max(int(dim), align)
    n_blocks = _cdiv(dim, max_tile)
    return _round_up(_cdiv(dim, n_blocks), align)


def _default_tile_maxes():
    """Generation-aware tile caps: go wider on 128-MiB-VMEM chips (v5e/v6e)."""
    tm_max, tn_max, tk_max = 512, 512, 1024          # safe on v7x (64 MiB VMEM)
    try:
        vmem_bytes = pltpu.get_tpu_info().vmem_capacity_bytes
    except Exception:
        vmem_bytes = 64 * 1024 * 1024
    if vmem_bytes >= 100 * 1024 * 1024:              # v5e / v6e (128 MiB VMEM)
        tn_max, tk_max = 1024, 2048
    return tm_max, tn_max, tk_max


# -------------------------------- kernels -----------------------------------

def _linear_kernel_f32(x_ref, w_ref, b_ref, o_ref, *, precision):
    # f32 output: accumulate directly into the resident output tile (no scratch).
    @pl.when(pl.program_id(2) == 0)
    def _():
        o_ref[...] = jnp.broadcast_to(b_ref[...], o_ref.shape)

    o_ref[...] += jnp.dot(x_ref[...], w_ref[...],
                          preferred_element_type=jnp.float32,
                          precision=precision)


def _linear_kernel_acc(x_ref, w_ref, b_ref, o_ref, acc_ref, *, precision):
    # Non-f32 output: f32 VMEM accumulator, cast on the last K step.
    k = pl.program_id(2)

    @pl.when(k == 0)
    def _():
        acc_ref[...] = jnp.zeros_like(acc_ref)

    acc_ref[...] += jnp.dot(x_ref[...], w_ref[...],
                            preferred_element_type=jnp.float32,
                            precision=precision)

    @pl.when(k == pl.num_programs(2) - 1)
    def _():
        o_ref[...] = (acc_ref[...] + b_ref[...]).astype(o_ref.dtype)


# ----------------------------- host-side wrapper -----------------------------

def prepare_linear_params(weight, bias, *, tm_max=None, tn_max=None, tk_max=None,
                          batch_hint=None):
    """Hoisted, one-time parameter prep (transpose + pad) for the Pallas Linear.

    weight: (out_features, in_features)  [PyTorch nn.Linear layout]
    bias:   (out_features,)
    """
    N, K = weight.shape
    d_tm, d_tn, d_tk = _default_tile_maxes()
    tm_max = d_tm if tm_max is None else tm_max
    tn_max = d_tn if tn_max is None else tn_max
    tk_max = d_tk if tk_max is None else tk_max

    tn = _pick_tile(N, tn_max, 128)
    tk = _pick_tile(K, tk_max, 128)
    N_pad = _round_up(N, tn)
    K_pad = _round_up(K, tk)

    # v7x shards "parallel" grid axes over 2 TensorCores: if the batch would
    # collapse the M axis to a single block, make sure N has >= 2 blocks.
    sub_align = max(8, 32 // jnp.dtype(weight.dtype).itemsize)
    m_blocks_hint = 1 if batch_hint is None else _cdiv(
        _round_up(max(int(batch_hint), 1), sub_align), tm_max)
    if m_blocks_hint < 2 and N_pad // tn < 2 and N_pad > 128:
        tn = _round_up(_cdiv(N_pad, 2), 128)
        N_pad = _round_up(N, tn)

    # One-time HBM layout change: (K, N) so MXU RHS tiles need no per-tile transpose.
    w_t = weight.T
    if (K_pad, N_pad) != (K, N):
        w_t = jnp.pad(w_t, ((0, K_pad - K), (0, N_pad - N)))
    bias2d = bias.astype(jnp.float32).reshape(1, N)
    if N_pad != N:
        bias2d = jnp.pad(bias2d, ((0, 0), (0, N_pad - N)))

    return dict(w_t=w_t, bias2d=bias2d, out_features=N, in_features=K,
                tm_max=tm_max, tn=tn, tk=tk)


def linear_forward_prepared(x, params, *, precision=None):
    """Forward with pre-prepared (padded, transposed) weight/bias."""
    w_t, bias2d = params["w_t"], params["bias2d"]
    N, K = params["out_features"], params["in_features"]
    tn, tk, tm_max = params["tn"], params["tk"], params["tm_max"]

    B, Kx = x.shape
    assert Kx == K, (Kx, K)
    K_pad, N_pad = w_t.shape

    itemsize = jnp.dtype(x.dtype).itemsize
    out_dtype = x.dtype
    sub_align = max(8, 32 // itemsize)               # 8 for f32, 16 for bf16
    tm = _pick_tile(B, tm_max, sub_align)
    M_pad = _round_up(B, tm)

    if (M_pad, K_pad) != (B, K):
        x = jnp.pad(x, ((0, M_pad - B), (0, K_pad - K)))

    grid = (M_pad // tm, N_pad // tn, K_pad // tk)

    if precision is None and out_dtype == jnp.float32:
        # Parity with the fp32 PyTorch module (full-precision MXU passes).
        precision = jax.lax.Precision.HIGHEST

    if out_dtype == jnp.float32:
        kernel = functools.partial(_linear_kernel_f32, precision=precision)
        scratch_shapes = []
    else:
        kernel = functools.partial(_linear_kernel_acc, precision=precision)
        scratch_shapes = [pltpu.VMEM((tm, tn), jnp.float32)]

    # VMEM budget: double-buffered x/w/out/bias tiles (+ optional f32 scratch).
    vmem_need = (2 * (tm * tk + tk * tn) * itemsize
                 + 2 * tm * tn * jnp.dtype(out_dtype).itemsize
                 + 2 * tn * 4
                 + (0 if not scratch_shapes else tm * tn * 4))
    vmem_limit = max(48 * 1024 * 1024, int(1.25 * vmem_need))

    bytes_accessed = ((N_pad // tn) * M_pad * K_pad * itemsize      # x re-reads
                      + (M_pad // tm) * K_pad * N_pad * itemsize    # w re-reads
                      + M_pad * N_pad * jnp.dtype(out_dtype).itemsize
                      + N_pad * 4)
    cost = pl.CostEstimate(flops=2 * M_pad * N_pad * K_pad,
                           transcendentals=0,
                           bytes_accessed=bytes_accessed)

    out_padded = pl.pallas_call(
        kernel,
        out_shape=jax.ShapeDtypeStruct((M_pad, N_pad), out_dtype),
        grid_spec=pltpu.PrefetchScalarGridSpec(
            num_scalar_prefetch=0,
            grid=grid,
            in_specs=[
                pl.BlockSpec((tm, tk), lambda i, j, k: (i, k)),
                pl.BlockSpec((tk, tn), lambda i, j, k: (k, j)),
                pl.BlockSpec((1, tn), lambda i, j, k: (0, j)),
            ],
            out_specs=pl.BlockSpec((tm, tn), lambda i, j, k: (i, j)),
            scratch_shapes=scratch_shapes,
        ),
        compiler_params=pltpu.CompilerParams(
            dimension_semantics=("parallel", "parallel", "arbitrary"),
            vmem_limit_bytes=vmem_limit,
        ),
        cost_estimate=cost,
    )(x, w_t, bias2d)

    if (M_pad, N_pad) != (B, N):
        out_padded = out_padded[:B, :N]
    return out_padded


def linear_forward(x, weight, bias, *, precision=None, **tile_kwargs):
    """One-shot equivalent of LinearFunction.forward (prepares params per call).

    Prefer prepare_linear_params() + linear_forward_prepared() so the weight
    transpose/pad stays out of the per-call hot path.
    """
    params = prepare_linear_params(weight, bias, batch_hint=x.shape[0], **tile_kwargs)
    return linear_forward_prepared(x, params, precision=precision)


# --------------------------------- testing ----------------------------------

def _make_params(key, in_features, out_features, dtype=jnp.float32):
    kw, kb = jax.random.split(key)
    bound = (1.0 / in_features) ** 0.5
    weight = jax.random.uniform(kw, (out_features, in_features), dtype,
                                minval=-bound, maxval=bound)
    bias = jax.random.uniform(kb, (out_features,), dtype,
                              minval=-bound, maxval=bound)
    return weight, bias


def _reference(x, weight, bias):
    return (jnp.dot(x.astype(jnp.float32), weight.astype(jnp.float32).T,
                    precision=jax.lax.Precision.HIGHEST)
            + bias.astype(jnp.float32).reshape(1, -1))


def _check(out, ref, atol, rtol, name):
    assert out.shape == ref.shape, (name, out.shape, ref.shape)
    out_f32 = out.astype(jnp.float32)
    max_err = float(jnp.max(jnp.abs(out_f32 - ref)))
    assert jnp.allclose(out_f32, ref, atol=atol, rtol=rtol), (name, max_err)


if __name__ == "__main__":
    # TODO(synk): only the forward pass is implemented; the autograd backward
    # (grad_input / grad_weight / grad_bias) is not part of this kernel.
    key = jax.random.PRNGKey(0)

    # Case 1: small shapes consistent with the module (batch, in_features).
    B1, K1, N1 = 8, 32, 16
    k1, k2, k3 = jax.random.split(key, 3)
    w1, b1 = _make_params(k2, K1, N1)
    x1 = jax.random.normal(k1, (B1, K1), jnp.float32)
    params1 = prepare_linear_params(w1, b1, batch_hint=B1)      # hoisted prep
    fwd1 = jax.jit(functools.partial(linear_forward_prepared, params=params1))
    out1 = jax.block_until_ready(fwd1(x1))
    _check(out1, _reference(x1, w1, b1), 1e-5, 1e-5, "small f32")

    # Case 2: multi-tile grid with a non-tile-aligned batch (remainder handling),
    # small tile caps to force multiple M/N/K grid steps.
    B2, K2, N2 = 260, 1024, 384
    k4, k5, _ = jax.random.split(k3, 3)
    w2, b2 = _make_params(k5, K2, N2)
    x2 = jax.random.normal(k4, (B2, K2), jnp.float32)
    out2 = jax.block_until_ready(
        linear_forward(x2, w2, b2, tm_max=128, tn_max=128, tk_max=256))
    _check(out2, _reference(x2, w2, b2), 2e-4, 2e-4, "tiled f32")

    # Case 3: bf16 inputs/weights (f32 accumulation in VMEM scratch), default tiles.
    x3 = x2.astype(jnp.bfloat16)
    w3 = w2.astype(jnp.bfloat16)
    out3 = jax.block_until_ready(linear_forward(x3, w3, b2))
    _check(out3, _reference(x3, w3, b2), 3e-2, 3e-2, "bf16")

    print("KERNEL_OK")
</pallas_src>

<mosaic_0001>
module attributes {stable_mosaic.version = 11 : i64} {
  func.func @_linear_kernel_f32(%arg0: i32, %arg1: i32, %arg2: i32, %arg3: memref<8x128xf32, #tpu.memory_space<vmem>>, %arg4: memref<128x128xf32, #tpu.memory_space<vmem>>, %arg5: memref<1x128xf32, #tpu.memory_space<vmem>>, %arg6: memref<8x128xf32, #tpu.memory_space<vmem>>) attributes {dimension_semantics = [#tpu.dimension_semantics<parallel>, #tpu.dimension_semantics<parallel>, #tpu.dimension_semantics<arbitrary>], iteration_bounds = array<i64: 1, 1, 1>, scalar_prefetch = 0 : i64, scratch_operands = 0 : i64, tpu.core_type = #tpu.core_type<tc>, window_params = [{transform_indices = @transform_0, window_bounds = array<i64: 8, 128>}, {transform_indices = @transform_1, window_bounds = array<i64: 128, 128>}, {transform_indices = @transform_2, window_bounds = array<i64: 1, 128>}, {transform_indices = @transform_3, window_bounds = array<i64: 8, 128>}]} {
    %c0_i32 = arith.constant 0 : i32
    %0 = arith.cmpi eq, %arg2, %c0_i32 : i32
    %1 = arith.extui %0 : i1 to i32
    %c0_i32_0 = arith.constant 0 : i32
    %2 = arith.cmpi ne, %1, %c0_i32_0 : i32
    scf.if %2 {
      %c0_8 = arith.constant 0 : index
      %c0_9 = arith.constant 0 : index
      %9 = vector.load %arg5[%c0_8, %c0_9] : memref<1x128xf32, #tpu.memory_space<vmem>>, vector<1x128xf32>
      %10 = vector.shape_cast %9 : vector<1x128xf32> to vector<1x128xf32>
      %11 = vector.broadcast %10 : vector<1x128xf32> to vector<8x128xf32>
      %c0_10 = arith.constant 0 : index
      %c0_11 = arith.constant 0 : index
      %12 = vector.load %arg6[%c0_10, %c0_11] : memref<8x128xf32, #tpu.memory_space<vmem>>, vector<8x128xf32>
      tpu.vector_store %arg6[%c0_10, %c0_11], %11 {strides = array<i32>} : memref<8x128xf32, #tpu.memory_space<vmem>>, vector<8x128xf32>,
    } else {
    }
    %c0 = arith.constant 0 : index
    %c0_1 = arith.constant 0 : index
    %3 = vector.load %arg6[%c0, %c0_1] : memref<8x128xf32, #tpu.memory_space<vmem>>, vector<8x128xf32>
    %c0_2 = arith.constant 0 : index
    %c0_3 = arith.constant 0 : index
    %4 = vector.load %arg3[%c0_2, %c0_3] : memref<8x128xf32, #tpu.memory_space<vmem>>, vector<8x128xf32>
    %c0_4 = arith.constant 0 : index
    %c0_5 = arith.constant 0 : index
    %5 = vector.load %arg4[%c0_4, %c0_5] : memref<128x128xf32, #tpu.memory_space<vmem>>, vector<128x128xf32>
    %cst = arith.constant dense<0.000000e+00> : vector<8x128xf32>
    %6 = tpu.matmul %4, %5, %cst {dimension_numbers = #tpu.dot_dimension_numbers<[1], [0], [0], [1], [0, 0, 1, 1], [], []>, precision = #tpu.contract_precision<fp32>} : vector<8x128xf32>, vector<128x128xf32>, vector<8x128xf32> -> vector<8x128xf32>
    %7 = arith.addf %3, %6 : vector<8x128xf32>
    %c0_6 = arith.constant 0 : index
    %c0_7 = arith.constant 0 : index
    %8 = vector.load %arg6[%c0_6, %c0_7] : memref<8x128xf32, #tpu.memory_space<vmem>>, vector<8x128xf32>
    tpu.vector_store %arg6[%c0_6, %c0_7], %7 {strides = array<i32>} : memref<8x128xf32, #tpu.memory_space<vmem>>, vector<8x128xf32>,
    return
  }
  func.func @transform_0(%arg0: i32, %arg1: i32, %arg2: i32) -> (i32, i32) {
    %c0_i32 = arith.constant 0 : i32
    return %arg0, %arg2 : i32, i32
  }
  func.func @transform_1(%arg0: i32, %arg1: i32, %arg2: i32) -> (i32, i32) {
    %c0_i32 = arith.constant 0 : i32
    return %arg2, %arg1 : i32, i32
  }
  func.func @transform_2(%arg0: i32, %arg1: i32, %arg2: i32) -> (i32, i32) {
    %c0_i32 = arith.constant 0 : i32
    %c0_i32_0 = arith.constant 0 : i32
    return %c0_i32, %arg1 : i32, i32
  }
  func.func @transform_3(%arg0: i32, %arg1: i32, %arg2: i32) -> (i32, i32) {
    %c0_i32 = arith.constant 0 : i32
    return %arg0, %arg1 : i32, i32
  }
}

</mosaic_0001>

<llo_original>
// kernel: linear_forward_prepared.1
$region0: #{linear_forward_prepared.1}
  #allocation0 [shape = 'u32[]', space=smem, size = 0x4, offset = 0x4, fixed_abs, tag = 'smem constant byte address 0x4 - core index']
  #allocation1 [shape = 'u32[144,128]{1,0:T(1,128)}', space=vmem, size = 0x12000, scoped, tag = 'internal scratch']
  %s0 = inlined_call_operand.vmem [shape: f32[8,128], index: 0, kind: input, shape index: {}]
  %s1 = inlined_call_operand.hbm [shape: f32[128,128], index: 1, kind: input, shape index: {}]
  %s2 = inlined_call_operand.vmem [shape: f32[1,128], index: 2, kind: input, shape index: {}]
  %s3 = inlined_call_operand.hbm [shape: f32[8,128], index: 3, kind: output, shape index: {}]
  %s4 = sld [smem:[#allocation0]]
  $region30: #{linear_forward_prepared.1} parent=0
    _
  %s6 = ssub.s32 1, %s4
  %s7 = scalar_select 0, %s6, %s4
  $region1: #{linear_forward_prepared.1} parent=0
    #allocation2 [shape = 'u8[65536]{0}', space=vmem, size = 0x10000, scoped, tag = 'input window, operand 1, single buffered']
    #allocation3 [shape = 's32[1]{0}', space=sflag, size = 0x4, scoped, tag = 'scoped memory for linear_forward_prepared.1']
    #allocation4 [shape = 's32[1]{0}', space=sflag, size = 0x4, scoped, tag = 'scoped memory for linear_forward_prepared.1']
    #allocation5 [shape = 'u8[4096]{0}', space=vmem, size = 0x1000, scoped, tag = 'output window, operand 0, single buffered']
    %8 = vsyncpa [#allocation3], 0
    %9 = vsyncpa [#allocation4], 0
    // Predicated region
    $region2: #{linear_forward_prepared.1} parent=1 // pred_check
      _
    $region3: #{linear_forward_prepared.1} parent=1 // pred_check_branch
      %11 = sbr.rel (0) target = $region5
    $region4: #{linear_forward_prepared.1} parent=1 // pred_region
      _
    $region5: #{linear_forward_prepared.1} parent=1 // pred_fallthru
      _
    // Predicated region
    $region6: #{linear_forward_prepared.1} parent=1 // pred_check
      _
    $region7: #{linear_forward_prepared.1} parent=1 // pred_check_branch
      %13 = sbr.rel (0) target = $region9
    $region8: #{linear_forward_prepared.1} parent=1 // pred_region
      %s15 = ssub.s32 2048, 2048
      %16 = vsyncadd [#allocation3], %s15
      %s17 = sshll.u32 [#allocation2], 4
      %s18 = int_to_ptr.vmem [resolvable:$true] %s17
      %23 = dma.hbm_to_vmem [thread:$0]  %s1, 2048, %s18, [#allocation3], 128, 128, 8
    $region9: #{linear_forward_prepared.1} parent=1 // pred_fallthru
      _
    // Predicated region
    $region10: #{linear_forward_prepared.1} parent=1 // pred_check
      _
    $region11: #{linear_forward_prepared.1} parent=1 // pred_check_branch
      %25 = sbr.rel (0) target = $region13
    $region12: #{linear_forward_prepared.1} parent=1 // pred_region
      _
    $region13: #{linear_forward_prepared.1} parent=1 // pred_fallthru
      _
    // Predicated region
    $region14: #{linear_forward_prepared.1} parent=1 // pred_check
      _
    $region15: #{linear_forward_prepared.1} parent=1 // pred_check_branch
      %27 = sbr.rel (0) target = $region17
    $region16: #{linear_forward_prepared.1} parent=1 // pred_region
      %28 = dma.done [#allocation3], 2048
    $region17: #{linear_forward_prepared.1} parent=1 // pred_fallthru
      _
    %p29 = scmp.eq.s32.totalorder 0, 0
    // Predicated region
    $region18: #{linear_forward_prepared.1} parent=1 // pred_check
      %p30 = pneg %p29
    $region19: #{linear_forward_prepared.1} parent=1 // pred_check_branch
      %32 = sbr.rel (%p30) target = $region21
    $region20: #{linear_forward_prepared.1} parent=1 // pred_region
      %v33 = vld [vmem:[%s2] sm:$0x1]
      %v35 = vlaneseq
      %v36 = vshrl.u32 %v35, 7
      %v37 = vsub.s32 0, %v36
      %v38 = vrot.slane %v33, %v37
      %40 = vst [vmem:[#allocation5] sm:$0xff] %v38
    $region21: #{linear_forward_prepared.1} parent=1 // pred_fallthru
      _
    %v41 = vld [vmem:[#allocation5] sm:$0xff]
    %v42 = vld [vmem:[%s0] sm:$0xff]
    %v43 = vld [vmem:[#allocation2] sm:$0xff]
    %v44 = vld [vmem:[#allocation2 + $0x8] sm:$0xff]
    %v45 = vld [vmem:[#allocation2 + $0x10] sm:$0xff]
    %v46 = vld [vmem:[#allocation2 + $0x18] sm:$0xff]
    %v47 = vld [vmem:[#allocation2 + $0x20] sm:$0xff]
    %v48 = vld [vmem:[#allocation2 + $0x28] sm:$0xff]
    %v49 = vld [vmem:[#allocation2 + $0x30] sm:$0xff]
    %v50 = vld [vmem:[#allocation2 + $0x38] sm:$0xff]
    %v51 = vld [vmem:[#allocation2 + $0x40] sm:$0xff]
    %v52 = vld [vmem:[#allocation2 + $0x48] sm:$0xff]
    %v53 = vld [vmem:[#allocation2 + $0x50] sm:$0xff]
    %v54 = vld [vmem:[#allocation2 + $0x58] sm:$0xff]
    %v55 = vld [vmem:[#allocation2 + $0x60] sm:$0xff]
    %v56 = vld [vmem:[#allocation2 + $0x68] sm:$0xff]
    %v57 = vld [vmem:[#allocation2 + $0x70] sm:$0xff]
    %v58 = vld [vmem:[#allocation2 + $0x78] sm:$0xff]
    %59 = vmatprep.subr.mxu0 0.0
    %v60 = vand.u32 %v43, 4294901760
    %61 = vmatpush1.msra.mxu0 %v60
    %62 = vmatprep.subr.mxu0 0.0
    %v63 = vand.u32 %v44, 4294901760
    %64 = vmatpush1.msra.mxu0 %v63
    %65 = vmatprep.subr.mxu0 0.0
    %v66 = vand.u32 %v45, 4294901760
    %67 = vmatpush1.msra.mxu0 %v66
    %68 = vmatprep.subr.mxu0 0.0
    %v69 = vand.u32 %v46, 4294901760
    %70 = vmatpush1.msra.mxu0 %v69
    %71 = vmatprep.subr.mxu0 0.0
    %v72 = vand.u32 %v47, 4294901760
    %73 = vmatpush1.msra.mxu0 %v72
    %74 = vmatprep.subr.mxu0 0.0
    %v75 = vand.u32 %v48, 4294901760
    %76 = vmatpush1.msra.mxu0 %v75
    %77 = vmatprep.subr.mxu0 0.0
    %v78 = vand.u32 %v49, 4294901760
    %79 = vmatpush1.msra.mxu0 %v78
    %80 = vmatprep.subr.mxu0 0.0
    %v81 = vand.u32 %v50, 4294901760
    %82 = vmatpush1.msra.mxu0 %v81
    %83 = vmatprep.subr.mxu0 0.0
    %v84 = vand.u32 %v51, 4294901760
    %85 = vmatpush1.msra.mxu0 %v84
    %86 = vmatprep.subr.mxu0 0.0
    %v87 = vand.u32 %v52, 4294901760
    %88 = vmatpush1.msra.mxu0 %v87
    %89 = vmatprep.subr.mxu0 0.0
    %v90 = vand.u32 %v53, 4294901760
    %91 = vmatpush1.msra.mxu0 %v90
    %92 = vmatprep.subr.mxu0 0.0
    %v93 = vand.u32 %v54, 4294901760
    %94 = vmatpush1.msra.mxu0 %v93
    %95 = vmatprep.subr.mxu0 0.0
    %v96 = vand.u32 %v55, 4294901760
    %97 = vmatpush1.msra.mxu0 %v96
    %98 = vmatprep.subr.mxu0 0.0
    %v99 = vand.u32 %v56, 4294901760
    %100 = vmatpush1.msra.mxu0 %v99
    %101 = vmatprep.subr.mxu0 0.0
    %v102 = vand.u32 %v57, 4294901760
    %103 = vmatpush1.msra.mxu0 %v102
    %104 = vmatprep.subr.mxu0 0.0
    %v105 = vand.u32 %v58, 4294901760
    %106 = vmatpush1.msra.mxu0 %v105
    %107 = vmatprep.subr.mxu0 0.0
    %108 = vmatpush1.msra.mxu0 0.0
    %109 = vmatprep.subr.mxu0 0.0
    %110 = vmatpush1.msra.mxu0 0.0
    %111 = vmatprep.subr.mxu0 0.0
    %112 = vmatpush1.msra.mxu0 0.0
    %113 = vmatprep.subr.mxu0 0.0
    %114 = vmatpush1.msra.mxu0 0.0
    %115 = vmatprep.subr.mxu0 0.0
    %116 = vmatpush1.msra.mxu0 0.0
    %117 = vmatprep.subr.mxu0 0.0
    %118 = vmatpush1.msra.mxu0 0.0
    %119 = vmatprep.subr.mxu0 0.0
    %120 = vmatpush1.msra.mxu0 0.0
    %121 = vmatprep.subr.mxu0 0.0
    %122 = vmatpush1.msra.mxu0 0.0
    %123 = vmatprep.subr.mxu0 0.0
    %124 = vmatpush1.msra.mxu0 0.0
    %125 = vmatprep.subr.mxu0 0.0
    %126 = vmatpush1.msra.mxu0 0.0
    %127 = vmatprep.subr.mxu0 0.0
    %128 = vmatpush1.msra.mxu0 0.0
    %129 = vmatprep.subr.mxu0 0.0
    %130 = vmatpush1.msra.mxu0 0.0
    %131 = vmatprep.subr.mxu0 0.0
    %132 = vmatpush1.msra.mxu0 0.0
    %133 = vmatprep.subr.mxu0 0.0
    %134 = vmatpush1.msra.mxu0 0.0
    %135 = vmatprep.subr.mxu0 0.0
    %136 = vmatpush1.msra.mxu0 0.0
    %137 = vmatprep.subr.mxu0 0.0
    %138 = vmatpush1.msra.mxu0 0.0
    %139 = vmatprep.mubr.f32.mxu0 0.0
    %v140 = vand.u32 %v42, 4294901760
    %v141 = vsub.f32 %v42, %v140
    %v142 = vand.u32 %v141, 4294901760
    %v143 = vsub.f32 %v141, %v142
    %v144 = vand.u32 %v143, 4294901760
    %145 = vmatmul.mubr.f32.gmra.mrb[0].mxu0 %v144
    %v146 = vpop.f32.mrb[0].mxu0
    %v147 = vadd.f32 0.0, %v146
    %v148 = vpop.f32.mrb[0].mxu0
    %149 = vdwg.mxu0
    %150 = vmatprep.subr.mxu0 0.0
    %v151 = vand.u32 %v43, 4294901760
    %v152 = vsub.f32 %v43, %v151
    %v153 = vand.u32 %v152, 4294901760
    %v154 = vsub.f32 %v152, %v153
    %v155 = vand.u32 %v154, 4294901760
    %156 = vmatpush1.msra.mxu0 %v155
    %157 = vmatprep.subr.mxu0 0.0
    %v158 = vand.u32 %v44, 4294901760
    %v159 = vsub.f32 %v44, %v158
    %v160 = vand.u32 %v159, 4294901760
    %v161 = vsub.f32 %v159, %v160
    %v162 = vand.u32 %v161, 4294901760
    %163 = vmatpush1.msra.mxu0 %v162
    %164 = vmatprep.subr.mxu0 0.0
    %v165 = vand.u32 %v45, 4294901760
    %v166 = vsub.f32 %v45, %v165
    %v167 = vand.u32 %v166, 4294901760
    %v168 = vsub.f32 %v166, %v167
    %v169 = vand.u32 %v168, 4294901760
    %170 = vmatpush1.msra.mxu0 %v169
    %171 = vmatprep.subr.mxu0 0.0
    %v172 = vand.u32 %v46, 4294901760
    %v173 = vsub.f32 %v46, %v172
    %v174 = vand.u32 %v173, 4294901760
    %v175 = vsub.f32 %v173, %v174
    %v176 = vand.u32 %v175, 4294901760
    %177 = vmatpush1.msra.mxu0 %v176
    %178 = vmatprep.subr.mxu0 0.0
    %v179 = vand.u32 %v47, 4294901760
    %v180 = vsub.f32 %v47, %v179
    %v181 = vand.u32 %v180, 4294901760
    %v182 = vsub.f32 %v180, %v181
    %v183 = vand.u32 %v182, 4294901760
    %184 = vmatpush1.msra.mxu0 %v183
    %185 = vmatprep.subr.mxu0 0.0
    %v186 = vand.u32 %v48, 4294901760
    %v187 = vsub.f32 %v48, %v186
    %v188 = vand.u32 %v187, 4294901760
    %v189 = vsub.f32 %v187, %v188
    %v190 = vand.u32 %v189, 4294901760
    %191 = vmatpush1.msra.mxu0 %v190
    %192 = vmatprep.subr.mxu0 0.0
    %v193 = vand.u32 %v49, 4294901760
    %v194 = vsub.f32 %v49, %v193
    %v195 = vand.u32 %v194, 4294901760
    %v196 = vsub.f32 %v194, %v195
    %v197 = vand.u32 %v196, 4294901760
    %198 = vmatpush1.msra.mxu0 %v197
    %199 = vmatprep.subr.mxu0 0.0
    %v200 = vand.u32 %v50, 4294901760
    %v201 = vsub.f32 %v50, %v200
    %v202 = vand.u32 %v201, 4294901760
    %v203 = vsub.f32 %v201, %v202
    %v204 = vand.u32 %v203, 4294901760
    %205 = vmatpush1.msra.mxu0 %v204
    %206 = vmatprep.subr.mxu0 0.0
    %v207 = vand.u32 %v51, 4294901760
    %v208 = vsub.f32 %v51, %v207
    %v209 = vand.u32 %v208, 4294901760
    %v210 = vsub.f32 %v208, %v209
    %v211 = vand.u32 %v210, 4294901760
    %212 = vmatpush1.msra.mxu0 %v211
    %213 = vmatprep.subr.mxu0 0.0
    %v214 = vand.u32 %v52, 4294901760
    %v215 = vsub.f32 %v52, %v214
    %v216 = vand.u32 %v215, 4294901760
    %v217 = vsub.f32 %v215, %v216
    %v218 = vand.u32 %v217, 4294901760
    %219 = vmatpush1.msra.mxu0 %v218
    %220 = vmatprep.subr.mxu0 0.0
    %v221 = vand.u32 %v53, 4294901760
    %v222 = vsub.f32 %v53, %v221
    %v223 = vand.u32 %v222, 4294901760
    %v224 = vsub.f32 %v222, %v223
    %v225 = vand.u32 %v224, 4294901760
    %226 = vmatpush1.msra.mxu0 %v225
    %227 = vmatprep.subr.mxu0 0.0
    %v228 = vand.u32 %v54, 4294901760
    %v229 = vsub.f32 %v54, %v228
    %v230 = vand.u32 %v229, 4294901760
    %v231 = vsub.f32 %v229, %v230
    %v232 = vand.u32 %v231, 4294901760
    %233 = vmatpush1.msra.mxu0 %v232
    %234 = vmatprep.subr.mxu0 0.0
    %v235 = vand.u32 %v55, 4294901760
    %v236 = vsub.f32 %v55, %v235
    %v237 = vand.u32 %v236, 4294901760
    %v238 = vsub.f32 %v236, %v237
    %v239 = vand.u32 %v238, 4294901760
    %240 = vmatpush1.msra.mxu0 %v239
    %241 = vmatprep.subr.mxu0 0.0
    %v242 = vand.u32 %v56, 4294901760
    %v243 = vsub.f32 %v56, %v242
    %v244 = vand.u32 %v243, 4294901760
    %v245 = vsub.f32 %v243, %v244
    %v246 = vand.u32 %v245, 4294901760
    %247 = vmatpush1.msra.mxu0 %v246
    %248 = vmatprep.subr.mxu0 0.0
    %v249 = vand.u32 %v57, 4294901760
    %v250 = vsub.f32 %v57, %v249
    %v251 = vand.u32 %v250, 4294901760
    %v252 = vsub.f32 %v250, %v251
    %v253 = vand.u32 %v252, 4294901760
    %254 = vmatpush1.msra.mxu0 %v253
    %255 = vmatprep.subr.mxu0 0.0
    %v256 = vand.u32 %v58, 4294901760
    %v257 = vsub.f32 %v58, %v256
    %v258 = vand.u32 %v257, 4294901760
    %v259 = vsub.f32 %v257, %v258
    %v260 = vand.u32 %v259, 4294901760
    %261 = vmatpush1.msra.mxu0 %v260
    %262 = vmatprep.subr.mxu0 0.0
    %263 = vmatpush1.msra.mxu0 0.0
    %264 = vmatprep.subr.mxu0 0.0
    %265 = vmatpush1.msra.mxu0 0.0
    %266 = vmatprep.subr.mxu0 0.0
    %267 = vmatpush1.msra.mxu0 0.0
    %268 = vmatprep.subr.mxu0 0.0
    %269 = vmatpush1.msra.mxu0 0.0
    %270 = vmatprep.subr.mxu0 0.0
    %271 = vmatpush1.msra.mxu0 0.0
    %272 = vmatprep.subr.mxu0 0.0
    %273 = vmatpush1.msra.mxu0 0.0
    %274 = vmatprep.subr.mxu0 0.0
    %275 = vmatpush1.msra.mxu0 0.0
    %276 = vmatprep.subr.mxu0 0.0
    %277 = vmatpush1.msra.mxu0 0.0
    %278 = vmatprep.subr.mxu0 0.0
    %279 = vmatpush1.msra.mxu0 0.0
    %280 = vmatprep.subr.mxu0 0.0
    %281 = vmatpush1.msra.mxu0 0.0
    %282 = vmatprep.subr.mxu0 0.0
    %283 = vmatpush1.msra.mxu0 0.0
    %284 = vmatprep.subr.mxu0 0.0
    %285 = vmatpush1.msra.mxu0 0.0
    %286 = vmatprep.subr.mxu0 0.0
    %287 = vmatpush1.msra.mxu0 0.0
    %288 = vmatprep.subr.mxu0 0.0
    %289 = vmatpush1.msra.mxu0 0.0
    %290 = vmatprep.subr.mxu0 0.0
    %291 = vmatpush1.msra.mxu0 0.0
    %292 = vmatprep.subr.mxu0 0.0
    %293 = vmatpush1.msra.mxu0 0.0
    %294 = vmatprep.mubr.f32.mxu0 0.0
    %v295 = vand.u32 %v42, 4294901760
    %296 = vmatmul.mubr.f32.gmra.mrb[0].mxu0 %v295
    %v297 = vpop.f32.mrb[0].mxu0
    %v298 = vadd.f32 %v147, %v297
    %v299 = vpop.f32.mrb[0].mxu0
    %300 = vdwg.mxu0
    %301 = vmatprep.subr.mxu0 0.0
    %v302 = vand.u32 %v43, 4294901760
    %v303 = vsub.f32 %v43, %v302
    %304 = vmatpush1.msra.mxu0 %v303
    %305 = vmatprep.subr.mxu0 0.0
    %v306 = vand.u32 %v44, 4294901760
    %v307 = vsub.f32 %v44, %v306
    %308 = vmatpush1.msra.mxu0 %v307
    %309 = vmatprep.subr.mxu0 0.0
    %v310 = vand.u32 %v45, 4294901760
    %v311 = vsub.f32 %v45, %v310
    %312 = vmatpush1.msra.mxu0 %v311
    %313 = vmatprep.subr.mxu0 0.0
    %v314 = vand.u32 %v46, 4294901760
    %v315 = vsub.f32 %v46, %v314
    %316 = vmatpush1.msra.mxu0 %v315
    %317 = vmatprep.subr.mxu0 0.0
    %v318 = vand.u32 %v47, 4294901760
    %v319 = vsub.f32 %v47, %v318
    %320 = vmatpush1.msra.mxu0 %v319
    %321 = vmatprep.subr.mxu0 0.0
    %v322 = vand.u32 %v48, 4294901760
    %v323 = vsub.f32 %v48, %v322
    %324 = vmatpush1.msra.mxu0 %v323
    %325 = vmatprep.subr.mxu0 0.0
    %v326 = vand.u32 %v49, 4294901760
    %v327 = vsub.f32 %v49, %v326
    %328 = vmatpush1.msra.mxu0 %v327
    %329 = vmatprep.subr.mxu0 0.0
    %v330 = vand.u32 %v50, 4294901760
    %v331 = vsub.f32 %v50, %v330
    %332 = vmatpush1.msra.mxu0 %v331
    %333 = vmatprep.subr.mxu0 0.0
    %v334 = vand.u32 %v51, 4294901760
    %v335 = vsub.f32 %v51, %v334
    %336 = vmatpush1.msra.mxu0 %v335
    %337 = vmatprep.subr.mxu0 0.0
    %v338 = vand.u32 %v52, 4294901760
    %v339 = vsub.f32 %v52, %v338
    %340 = vmatpush1.msra.mxu0 %v339
    %341 = vmatprep.subr.mxu0 0.0
    %v342 = vand.u32 %v53, 4294901760
    %v343 = vsub.f32 %v53, %v342
    %344 = vmatpush1.msra.mxu0 %v343
    %345 = vmatprep.subr.mxu0 0.0
    %v346 = vand.u32 %v54, 4294901760
    %v347 = vsub.f32 %v54, %v346
    %348 = vmatpush1.msra.mxu0 %v347
    %349 = vmatprep.subr.mxu0 0.0
    %v350 = vand.u32 %v55, 4294901760
    %v351 = vsub.f32 %v55, %v350
    %352 = vmatpush1.msra.mxu0 %v351
    %353 = vmatprep.subr.mxu0 0.0
    %v354 = vand.u32 %v56, 4294901760
    %v355 = vsub.f32 %v56, %v354
    %356 = vmatpush1.msra.mxu0 %v355
    %357 = vmatprep.subr.mxu0 0.0
    %v358 = vand.u32 %v57, 4294901760
    %v359 = vsub.f32 %v57, %v358
    %360 = vmatpush1.msra.mxu0 %v359
    %361 = vmatprep.subr.mxu0 0.0
    %v362 = vand.u32 %v58, 4294901760
    %v363 = vsub.f32 %v58, %v362
    %364 = vmatpush1.msra.mxu0 %v363
    %365 = vmatprep.subr.mxu0 0.0
    %366 = vmatpush1.msra.mxu0 0.0
    %367 = vmatprep.subr.mxu0 0.0
    %368 = vmatpush1.msra.mxu0 0.0
    %369 = vmatprep.subr.mxu0 0.0
    %370 = vmatpush1.msra.mxu0 0.0
    %371 = vmatprep.subr.mxu0 0.0
    %372 = vmatpush1.msra.mxu0 0.0
    %373 = vmatprep.subr.mxu0 0.0
    %374 = vmatpush1.msra.mxu0 0.0
    %375 = vmatprep.subr.mxu0 0.0
    %376 = vmatpush1.msra.mxu0 0.0
    %377 = vmatprep.subr.mxu0 0.0
    %378 = vmatpush1.msra.mxu0 0.0
    %379 = vmatprep.subr.mxu0 0.0
    %380 = vmatpush1.msra.mxu0 0.0
    %381 = vmatprep.subr.mxu0 0.0
    %382 = vmatpush1.msra.mxu0 0.0
    %383 = vmatprep.subr.mxu0 0.0
    %384 = vmatpush1.msra.mxu0 0.0
    %385 = vmatprep.subr.mxu0 0.0
    %386 = vmatpush1.msra.mxu0 0.0
    %387 = vmatprep.subr.mxu0 0.0
    %388 = vmatpush1.msra.mxu0 0.0
    %389 = vmatprep.subr.mxu0 0.0
    %390 = vmatpush1.msra.mxu0 0.0
    %391 = vmatprep.subr.mxu0 0.0
    %392 = vmatpush1.msra.mxu0 0.0
    %393 = vmatprep.subr.mxu0 0.0
    %394 = vmatpush1.msra.mxu0 0.0
    %395 = vmatprep.subr.mxu0 0.0
    %396 = vmatpush1.msra.mxu0 0.0
    %397 = vmatprep.mubr.f32.mxu0 0.0
    %v398 = vand.u32 %v42, 4294901760
    %v399 = vsub.f32 %v42, %v398
    %400 = vmatmul.mubr.f32.gmra.mrb[0].mxu0 %v399
    %v401 = vpop.f32.mrb[0].mxu0
    %v402 = vadd.f32 %v298, %v401
    %v403 = vpop.f32.mrb[0].mxu0
    %404 = vdwg.mxu0
    %405 = vmatprep.subr.mxu0 0.0
    %v406 = vand.u32 %v43, 4294901760
    %407 = vmatpush1.msra.mxu0 %v406
    %408 = vmatprep.subr.mxu0 0.0
    %v409 = vand.u32 %v44, 4294901760
    %410 = vmatpush1.msra.mxu0 %v409
    %411 = vmatprep.subr.mxu0 0.0
    %v412 = vand.u32 %v45, 4294901760
    %413 = vmatpush1.msra.mxu0 %v412
    %414 = vmatprep.subr.mxu0 0.0
    %v415 = vand.u32 %v46, 4294901760
    %416 = vmatpush1.msra.mxu0 %v415
    %417 = vmatprep.subr.mxu0 0.0
    %v418 = vand.u32 %v47, 4294901760
    %419 = vmatpush1.msra.mxu0 %v418
    %420 = vmatprep.subr.mxu0 0.0
    %v421 = vand.u32 %v48, 4294901760
    %422 = vmatpush1.msra.mxu0 %v421
    %423 = vmatprep.subr.mxu0 0.0
    %v424 = vand.u32 %v49, 4294901760
    %425 = vmatpush1.msra.mxu0 %v424
    %426 = vmatprep.subr.mxu0 0.0
    %v427 = vand.u32 %v50, 4294901760
    %428 = vmatpush1.msra.mxu0 %v427
    %429 = vmatprep.subr.mxu0 0.0
    %v430 = vand.u32 %v51, 4294901760
    %431 = vmatpush1.msra.mxu0 %v430
    %432 = vmatprep.subr.mxu0 0.0
    %v433 = vand.u32 %v52, 4294901760
    %434 = vmatpush1.msra.mxu0 %v433
    %435 = vmatprep.subr.mxu0 0.0
    %v436 = vand.u32 %v53, 4294901760
    %437 = vmatpush1.msra.mxu0 %v436
    %438 = vmatprep.subr.mxu0 0.0
    %v439 = vand.u32 %v54, 4294901760
    %440 = vmatpush1.msra.mxu0 %v439
    %441 = vmatprep.subr.mxu0 0.0
    %v442 = vand.u32 %v55, 4294901760
    %443 = vmatpush1.msra.mxu0 %v442
    %444 = vmatprep.subr.mxu0 0.0
    %v445 = vand.u32 %v56, 4294901760
    %446 = vmatpush1.msra.mxu0 %v445
    %447 = vmatprep.subr.mxu0 0.0
    %v448 = vand.u32 %v57, 4294901760
    %449 = vmatpush1.msra.mxu0 %v448
    %450 = vmatprep.subr.mxu0 0.0
    %v451 = vand.u32 %v58, 4294901760
    %452 = vmatpush1.msra.mxu0 %v451
    %453 = vmatprep.subr.mxu0 0.0
    %454 = vmatpush1.msra.mxu0 0.0
    %455 = vmatprep.subr.mxu0 0.0
    %456 = vmatpush1.msra.mxu0 0.0
    %457 = vmatprep.subr.mxu0 0.0
    %458 = vmatpush1.msra.mxu0 0.0
    %459 = vmatprep.subr.mxu0 0.0
    %460 = vmatpush1.msra.mxu0 0.0
    %461 = vmatprep.subr.mxu0 0.0
    %462 = vmatpush1.msra.mxu0 0.0
    %463 = vmatprep.subr.mxu0 0.0
    %464 = vmatpush1.msra.mxu0 0.0
    %465 = vmatprep.subr.mxu0 0.0
    %466 = vmatpush1.msra.mxu0 0.0
    %467 = vmatprep.subr.mxu0 0.0
    %468 = vmatpush1.msra.mxu0 0.0
    %469 = vmatprep.subr.mxu0 0.0
    %470 = vmatpush1.msra.mxu0 0.0
    %471 = vmatprep.subr.mxu0 0.0
    %472 = vmatpush1.msra.mxu0 0.0
    %473 = vmatprep.subr.mxu0 0.0
    %474 = vmatpush1.msra.mxu0 0.0
    %475 = vmatprep.subr.mxu0 0.0
    %476 = vmatpush1.msra.mxu0 0.0
    %477 = vmatprep.subr.mxu0 0.0
    %478 = vmatpush1.msra.mxu0 0.0
    %479 = vmatprep.subr.mxu0 0.0
    %480 = vmatpush1.msra.mxu0 0.0
    %481 = vmatprep.subr.mxu0 0.0
    %482 = vmatpush1.msra.mxu0 0.0
    %483 = vmatprep.subr.mxu0 0.0
    %484 = vmatpush1.msra.mxu0 0.0
    %485 = vmatprep.mubr.f32.mxu0 0.0
    %v486 = vand.u32 %v42, 4294901760
    %v487 = vsub.f32 %v42, %v486
    %v488 = vand.u32 %v487, 4294901760
    %489 = vmatmul.mubr.f32.gmra.mrb[0].mxu0 %v488
    %v490 = vpop.f32.mrb[0].mxu0
    %v491 = vadd.f32 %v402, %v490
    %v492 = vpop.f32.mrb[0].mxu0
    %493 = vdwg.mxu0
    %494 = vmatprep.subr.mxu0 0.0
    %v495 = vand.u32 %v43, 4294901760
    %v496 = vsub.f32 %v43, %v495
    %v497 = vand.u32 %v496, 4294901760
    %498 = vmatpush1.msra.mxu0 %v497
    %499 = vmatprep.subr.mxu0 0.0
    %v500 = vand.u32 %v44, 4294901760
    %v501 = vsub.f32 %v44, %v500
    %v502 = vand.u32 %v501, 4294901760
    %503 = vmatpush1.msra.mxu0 %v502
    %504 = vmatprep.subr.mxu0 0.0
    %v505 = vand.u32 %v45, 4294901760
    %v506 = vsub.f32 %v45, %v505
    %v507 = vand.u32 %v506, 4294901760
    %508 = vmatpush1.msra.mxu0 %v507
    %509 = vmatprep.subr.mxu0 0.0
    %v510 = vand.u32 %v46, 4294901760
    %v511 = vsub.f32 %v46, %v510
    %v512 = vand.u32 %v511, 4294901760
    %513 = vmatpush1.msra.mxu0 %v512
    %514 = vmatprep.subr.mxu0 0.0
    %v515 = vand.u32 %v47, 4294901760
    %v516 = vsub.f32 %v47, %v515
    %v517 = vand.u32 %v516, 4294901760
    %518 = vmatpush1.msra.mxu0 %v517
    %519 = vmatprep.subr.mxu0 0.0
    %v520 = vand.u32 %v48, 4294901760
    %v521 = vsub.f32 %v48, %v520
    %v522 = vand.u32 %v521, 4294901760
    %523 = vmatpush1.msra.mxu0 %v522
    %524 = vmatprep.subr.mxu0 0.0
    %v525 = vand.u32 %v49, 4294901760
    %v526 = vsub.f32 %v49, %v525
    %v527 = vand.u32 %v526, 4294901760
    %528 = vmatpush1.msra.mxu0 %v527
    %529 = vmatprep.subr.mxu0 0.0
    %v530 = vand.u32 %v50, 4294901760
    %v531 = vsub.f32 %v50, %v530
    %v532 = vand.u32 %v531, 4294901760
    %533 = vmatpush1.msra.mxu0 %v532
    %534 = vmatprep.subr.mxu0 0.0
    %v535 = vand.u32 %v51, 4294901760
    %v536 = vsub.f32 %v51, %v535
    %v537 = vand.u32 %v536, 4294901760
    %538 = vmatpush1.msra.mxu0 %v537
    %539 = vmatprep.subr.mxu0 0.0
    %v540 = vand.u32 %v52, 4294901760
    %v541 = vsub.f32 %v52, %v540
    %v542 = vand.u32 %v541, 4294901760
    %543 = vmatpush1.msra.mxu0 %v542
    %544 = vmatprep.subr.mxu0 0.0
    %v545 = vand.u32 %v53, 4294901760
    %v546 = vsub.f32 %v53, %v545
    %v547 = vand.u32 %v546, 4294901760
    %548 = vmatpush1.msra.mxu0 %v547
    %549 = vmatprep.subr.mxu0 0.0
    %v550 = vand.u32 %v54, 4294901760
    %v551 = vsub.f32 %v54, %v550
    %v552 = vand.u32 %v551, 4294901760
    %553 = vmatpush1.msra.mxu0 %v552
    %554 = vmatprep.subr.mxu0 0.0
    %v555 = vand.u32 %v55, 4294901760
    %v556 = vsub.f32 %v55, %v555
    %v557 = vand.u32 %v556, 4294901760
    %558 = vmatpush1.msra.mxu0 %v557
    %559 = vmatprep.subr.mxu0 0.0
    %v560 = vand.u32 %v56, 4294901760
    %v561 = vsub.f32 %v56, %v560
    %v562 = vand.u32 %v561, 4294901760
    %563 = vmatpush1.msra.mxu0 %v562
    %564 = vmatprep.subr.mxu0 0.0
    %v565 = vand.u32 %v57, 4294901760
    %v566 = vsub.f32 %v57, %v565
    %v567 = vand.u32 %v566, 4294901760
    %568 = vmatpush1.msra.mxu0 %v567
    %569 = vmatprep.subr.mxu0 0.0
    %v570 = vand.u32 %v58, 4294901760
    %v571 = vsub.f32 %v58, %v570
    %v572 = vand.u32 %v571, 4294901760
    %573 = vmatpush1.msra.mxu0 %v572
    %574 = vmatprep.subr.mxu0 0.0
    %575 = vmatpush1.msra.mxu0 0.0
    %576 = vmatprep.subr.mxu0 0.0
    %577 = vmatpush1.msra.mxu0 0.0
    %578 = vmatprep.subr.mxu0 0.0
    %579 = vmatpush1.msra.mxu0 0.0
    %580 = vmatprep.subr.mxu0 0.0
    %581 = vmatpush1.msra.mxu0 0.0
    %582 = vmatprep.subr.mxu0 0.0
    %583 = vmatpush1.msra.mxu0 0.0
    %584 = vmatprep.subr.mxu0 0.0
    %585 = vmatpush1.msra.mxu0 0.0
    %586 = vmatprep.subr.mxu0 0.0
    %587 = vmatpush1.msra.mxu0 0.0
    %588 = vmatprep.subr.mxu0 0.0
    %589 = vmatpush1.msra.mxu0 0.0
    %590 = vmatprep.subr.mxu0 0.0
    %591 = vmatpush1.msra.mxu0 0.0
    %592 = vmatprep.subr.mxu0 0.0
    %593 = vmatpush1.msra.mxu0 0.0
    %594 = vmatprep.subr.mxu0 0.0
    %595 = vmatpush1.msra.mxu0 0.0
    %596 = vmatprep.subr.mxu0 0.0
    %597 = vmatpush1.msra.mxu0 0.0
    %598 = vmatprep.subr.mxu0 0.0
    %599 = vmatpush1.msra.mxu0 0.0
    %600 = vmatprep.subr.mxu0 0.0
    %601 = vmatpush1.msra.mxu0 0.0
    %602 = vmatprep.subr.mxu0 0.0
    %603 = vmatpush1.msra.mxu0 0.0
    %604 = vmatprep.subr.mxu0 0.0
    %605 = vmatpush1.msra.mxu0 0.0
    %606 = vmatprep.mubr.f32.mxu0 0.0
    %v607 = vand.u32 %v42, 4294901760
    %608 = vmatmul.mubr.f32.gmra.mrb[0].mxu0 %v607
    %v609 = vpop.f32.mrb[0].mxu0
    %v610 = vadd.f32 %v491, %v609
    %v611 = vpop.f32.mrb[0].mxu0
    %612 = vdwg.mxu0
    %613 = vmatprep.subr.mxu0 0.0
    %v614 = vand.u32 %v43, 4294901760
    %615 = vmatpush1.msra.mxu0 %v614
    %616 = vmatprep.subr.mxu0 0.0
    %v617 = vand.u32 %v44, 4294901760
    %618 = vmatpush1.msra.mxu0 %v617
    %619 = vmatprep.subr.mxu0 0.0
    %v620 = vand.u32 %v45, 4294901760
    %621 = vmatpush1.msra.mxu0 %v620
    %622 = vmatprep.subr.mxu0 0.0
    %v623 = vand.u32 %v46, 4294901760
    %624 = vmatpush1.msra.mxu0 %v623
    %625 = vmatprep.subr.mxu0 0.0
    %v626 = vand.u32 %v47, 4294901760
    %627 = vmatpush1.msra.mxu0 %v626
    %628 = vmatprep.subr.mxu0 0.0
    %v629 = vand.u32 %v48, 4294901760
    %630 = vmatpush1.msra.mxu0 %v629
    %631 = vmatprep.subr.mxu0 0.0
    %v632 = vand.u32 %v49, 4294901760
    %633 = vmatpush1.msra.mxu0 %v632
    %634 = vmatprep.subr.mxu0 0.0
    %v635 = vand.u32 %v50, 4294901760
    %636 = vmatpush1.msra.mxu0 %v635
    %637 = vmatprep.subr.mxu0 0.0
    %v638 = vand.u32 %v51, 4294901760
    %639 = vmatpush1.msra.mxu0 %v638
    %640 = vmatprep.subr.mxu0 0.0
    %v641 = vand.u32 %v52, 4294901760
    %642 = vmatpush1.msra.mxu0 %v641
    %643 = vmatprep.subr.mxu0 0.0
    %v644 = vand.u32 %v53, 4294901760
    %645 = vmatpush1.msra.mxu0 %v644
    %646 = vmatprep.subr.mxu0 0.0
    %v647 = vand.u32 %v54, 4294901760
    %648 = vmatpush1.msra.mxu0 %v647
    %649 = vmatprep.subr.mxu0 0.0
    %v650 = vand.u32 %v55, 4294901760
    %651 = vmatpush1.msra.mxu0 %v650
    %652 = vmatprep.subr.mxu0 0.0
    %v653 = vand.u32 %v56, 4294901760
    %654 = vmatpush1.msra.mxu0 %v653
    %655 = vmatprep.subr.mxu0 0.0
    %v656 = vand.u32 %v57, 4294901760
    %657 = vmatpush1.msra.mxu0 %v656
    %658 = vmatprep.subr.mxu0 0.0
    %v659 = vand.u32 %v58, 4294901760
    %660 = vmatpush1.msra.mxu0 %v659
    %661 = vmatprep.subr.mxu0 0.0
    %662 = vmatpush1.msra.mxu0 0.0
    %663 = vmatprep.subr.mxu0 0.0
    %664 = vmatpush1.msra.mxu0 0.0
    %665 = vmatprep.subr.mxu0 0.0
    %666 = vmatpush1.msra.mxu0 0.0
    %667 = vmatprep.subr.mxu0 0.0
    %668 = vmatpush1.msra.mxu0 0.0
    %669 = vmatprep.subr.mxu0 0.0
    %670 = vmatpush1.msra.mxu0 0.0
    %671 = vmatprep.subr.mxu0 0.0
    %672 = vmatpush1.msra.mxu0 0.0
    %673 = vmatprep.subr.mxu0 0.0
    %674 = vmatpush1.msra.mxu0 0.0
    %675 = vmatprep.subr.mxu0 0.0
    %676 = vmatpush1.msra.mxu0 0.0
    %677 = vmatprep.subr.mxu0 0.0
    %678 = vmatpush1.msra.mxu0 0.0
    %679 = vmatprep.subr.mxu0 0.0
    %680 = vmatpush1.msra.mxu0 0.0
    %681 = vmatprep.subr.mxu0 0.0
    %682 = vmatpush1.msra.mxu0 0.0
    %683 = vmatprep.subr.mxu0 0.0
    %684 = vmatpush1.msra.mxu0 0.0
    %685 = vmatprep.subr.mxu0 0.0
    %686 = vmatpush1.msra.mxu0 0.0
    %687 = vmatprep.subr.mxu0 0.0
    %688 = vmatpush1.msra.mxu0 0.0
    %689 = vmatprep.subr.mxu0 0.0
    %690 = vmatpush1.msra.mxu0 0.0
    %691 = vmatprep.subr.mxu0 0.0
    %692 = vmatpush1.msra.mxu0 0.0
    %693 = vmatprep.mubr.f32.mxu0 0.0
    %v694 = vand.u32 %v42, 4294901760
    %695 = vmatmul.mubr.f32.gmra.mrb[0].mxu0 %v694
    %v696 = vpop.f32.mrb[0].mxu0
    %v697 = vadd.f32 %v610, %v696
    %v698 = vpop.f32.mrb[0].mxu0
    %699 = vdwg.mxu0
    %v700 = vadd.f32 %v41, %v697
    %701 = vst [vmem:[#allocation5] sm:$0xff] %v700
    // Predicated region
    $region22: #{linear_forward_prepared.1} parent=1 // pred_check
      _
    $region23: #{linear_forward_prepared.1} parent=1 // pred_check_branch
      %703 = sbr.rel (0) target = $region25
    $region24: #{linear_forward_prepared.1} parent=1 // pred_region
      %s705 = ssub.s32 128, 128
      %706 = vsyncadd [#allocation4], %s705
      %s708 = sshll.u32 [#allocation5], 4
      %s709 = int_to_ptr.vmem [resolvable:$true] %s708
      %711 = dma.vmem_to_hbm [thread:$0]  %s709, 128, %s3, [#allocation4]
    $region25: #{linear_forward_prepared.1} parent=1 // pred_fallthru
      _
    // Predicated region
    $region26: #{linear_forward_prepared.1} parent=1 // pred_check
      _
    $region27: #{linear_forward_prepared.1} parent=1 // pred_check_branch
      %713 = sbr.rel (0) target = $region29
    $region28: #{linear_forward_prepared.1} parent=1 // pred_region
      %714 = dma.done [#allocation4], 128
    $region29: #{linear_forward_prepared.1} parent=1 // pred_fallthru
      _
    %715 = vsyncpa [#allocation3], 1
    %716 = vsyncpa [#allocation4], 1

</llo_original>
